<compile_context>
chip_gen: v7x
topology: tpu7x:2x2x1
jax: 0.10.0
libtpu: 0.0.40
codegen_flags: <defaults>
</compile_context>

<pallas_src>
import math
import functools

import jax
import jax.numpy as jnp
from jax import lax
from jax.experimental import pallas as pl
from jax.experimental.pallas import tpu as pltpu

_MIB = 1024 * 1024


# --------------------------------------------------------------------------- #
# Generation-aware sizing helpers
# --------------------------------------------------------------------------- #
def _vmem_capacity_bytes():
    try:
        return int(pltpu.get_tpu_info().vmem_capacity_bytes)
    except Exception:
        return 64 * _MIB  # conservative (v7x per-TensorCore size)


def _pick_block(total, target):
    """Largest tile <= target that divides `total` (full extent if tiny/odd)."""
    if total <= target:
        return total
    blk = target
    while blk >= 8 and total % blk != 0:
        blk //= 2
    return blk if (blk >= 8 and total % blk == 0) else total


def _vmem_limit(bytes_needed, cap):
    limit = max(int(bytes_needed) + 8 * _MIB, 32 * _MIB)
    return min(limit, int(cap * 0.9))


# --------------------------------------------------------------------------- #
# Kernel A: fused Q/K/V projection (full d_model-wide matmuls, resident weights)
# --------------------------------------------------------------------------- #
def _qkv_proj_kernel(xq_ref, xk_ref, xv_ref,
                     wq_ref, wk_ref, wv_ref,
                     bq_ref, bk_ref, bv_ref,
                     q_ref, k_ref, v_ref, *, scale):
    def proj(x_ref, w_ref, b_ref):
        y = jnp.dot(x_ref[0], w_ref[...], preferred_element_type=jnp.float32)
        return y + b_ref[...]

    # 1/sqrt(d_k) folded into Q once (scores = (scale*Q) @ K^T).
    q_ref[0] = (proj(xq_ref, wq_ref, bq_ref) * scale).astype(q_ref.dtype)
    k_ref[0] = proj(xk_ref, wk_ref, bk_ref).astype(k_ref.dtype)
    v_ref[0] = proj(xv_ref, wv_ref, bv_ref).astype(v_ref.dtype)


# --------------------------------------------------------------------------- #
# Kernel B: per-head-group attention + accumulated output projection
# --------------------------------------------------------------------------- #
def _attention_kernel(q_ref, k_ref, v_ref, wo_ref, bo_ref, out_ref, acc_ref,
                      *, d_k, heads_per_step, mxu_dtype):
    g = pl.program_id(2)

    @pl.when(g == 0)
    def _init():
        acc_ref[...] = jnp.zeros_like(acc_ref)

    # Per-head attention inside the group (static unroll, G is small).
    ctx_parts = []
    for h in range(heads_per_step):
        lo = h * d_k
        qh = q_ref[0, :, lo:lo + d_k]          # (tq, d_k), already scaled
        kh = k_ref[0, :, lo:lo + d_k]          # (S,  d_k)
        vh = v_ref[0, :, lo:lo + d_k]          # (S,  d_k)

        # Q K^T without an explicit transpose: contract last dims of both.
        scores = lax.dot_general(
            qh, kh, dimension_numbers=(((1,), (1,)), ((), ())),
            preferred_element_type=jnp.float32)            # (tq, S)

        # Softmax over keys: f32, max-subtracted; approx reciprocal on the EUP.
        m = jnp.max(scores, axis=-1, keepdims=True)
        e = jnp.exp(scores - m)
        denom = jnp.sum(e, axis=-1, keepdims=True)
        attn = e * pl.reciprocal(denom, approx=True)       # (tq, S)

        ctx_parts.append(jnp.dot(attn.astype(mxu_dtype), vh,
                                 preferred_element_type=jnp.float32))  # (tq, d_k)

    ctx = ctx_parts[0] if len(ctx_parts) == 1 else jnp.concatenate(ctx_parts, -1)

    # This group's slice of the output projection: (tq, G*d_k) @ (G*d_k, D).
    wo_g = wo_ref[g]                                       # resident Wo, sliced per group
    acc_ref[...] += jnp.dot(ctx.astype(mxu_dtype), wo_g,
                            preferred_element_type=jnp.float32)

    @pl.when(g == pl.num_programs(2) - 1)
    def _finalize():
        out_ref[0] = (acc_ref[...] + bo_ref[...]).astype(out_ref.dtype)


# --------------------------------------------------------------------------- #
# Wrapper
# --------------------------------------------------------------------------- #
def multi_head_self_attention(query, key, value, params, *, nhead,
                              mxu_dtype=jnp.float32,
                              q_block=None, proj_block=None,
                              heads_per_step=None):
    """query/key/value: [B, S, D]. params: (in,out) weights (D, D), biases (D,).

    Set mxu_dtype=jnp.bfloat16 for ~2x MXU throughput on v5e/v6e/v7x (f32
    accumulation and f32 softmax are preserved); expect ~1e-2 relative error
    vs. a pure-f32 reference.
    """
    B, S, D = query.shape
    assert D % nhead == 0, "d_model must be divisible by nhead"
    d_k = D // nhead
    out_dtype = query.dtype
    cap = _vmem_capacity_bytes()

    # --- head grouping: smallest G with G*d_k a multiple of 128 lanes --------
    if heads_per_step is None:
        heads_per_step = nhead
        for g in range(1, nhead + 1):
            if nhead % g == 0 and (g * d_k) % 128 == 0:
                heads_per_step = g
                break
    G = heads_per_step
    assert nhead % G == 0
    g_dk = G * d_k
    assert (g_dk % 128 == 0) or (g_dk == D), "head group must be lane-aligned"
    n_groups = nhead // G

    # --- one-time casts / re-layouts (bf16 here halves DMA + VMEM) -----------
    cast = lambda a: a.astype(mxu_dtype)
    xq, xk, xv = cast(query), cast(key), cast(value)
    wq, wk, wv = cast(params["wq"]), cast(params["wk"]), cast(params["wv"])
    wo = cast(params["wo"]).reshape(n_groups, g_dk, D)     # per-group input slices
    bq = params["bq"].reshape(1, D).astype(jnp.float32)
    bk = params["bk"].reshape(1, D).astype(jnp.float32)
    bv = params["bv"].reshape(1, D).astype(jnp.float32)
    bo = params["bo"].reshape(1, D).astype(jnp.float32)

    itemsize = jnp.dtype(mxu_dtype).itemsize
    big_vmem = cap >= 96 * _MIB          # v5e/v6e: 128 MiB; v7x: 64 MiB

    # ------------------------------------------------------------------ A ---
    if proj_block is None:
        proj_block = _pick_block(S, 256 if big_vmem else 128)
    nm = S // proj_block

    proj_bytes = (2 * 6 * proj_block * D * itemsize        # x and out tiles (2 bufs)
                  + 2 * 3 * D * D * itemsize               # resident weights
                  + 2 * 3 * D * 4)                         # biases
    row_spec = pl.BlockSpec((1, proj_block, D), lambda b, m: (b, m, 0))
    w_spec = pl.BlockSpec((D, D), lambda b, m: (0, 0))
    b_spec = pl.BlockSpec((1, D), lambda b, m: (0, 0))

    q_proj, k_proj, v_proj = pl.pallas_call(
        functools.partial(_qkv_proj_kernel, scale=1.0 / math.sqrt(d_k)),
        out_shape=(jax.ShapeDtypeStruct((B, S, D), mxu_dtype),) * 3,
        grid_spec=pltpu.PrefetchScalarGridSpec(
            num_scalar_prefetch=0,
            grid=(B, nm),
            in_specs=[row_spec, row_spec, row_spec,
                      w_spec, w_spec, w_spec,
                      b_spec, b_spec, b_spec],
            out_specs=[row_spec, row_spec, row_spec],
        ),
        compiler_params=pltpu.CompilerParams(
            dimension_semantics=("parallel", "parallel"),
            vmem_limit_bytes=_vmem_limit(proj_bytes, cap),
        ),
    )(xq, xk, xv, wq, wk, wv, bq, bk, bv)

    # ------------------------------------------------------------------ B ---
    if q_block is None:
        q_block = _pick_block(S, 256 if big_vmem else 128)
    nq = S // q_block

    attn_bytes = (2 * q_block * g_dk * itemsize             # Q group tile
                  + 2 * 2 * S * g_dk * itemsize             # K, V group slabs
                  + 2 * D * D * itemsize                    # resident Wo
                  + 2 * D * 4                               # bo
                  + 2 * q_block * D * jnp.dtype(out_dtype).itemsize
                  + q_block * D * 4)                        # f32 accumulator

    out = pl.pallas_call(
        functools.partial(_attention_kernel, d_k=d_k, heads_per_step=G,
                          mxu_dtype=mxu_dtype),
        out_shape=jax.ShapeDtypeStruct((B, S, D), out_dtype),
        grid_spec=pltpu.PrefetchScalarGridSpec(
            num_scalar_prefetch=0,
            grid=(B, nq, n_groups),
            in_specs=[
                pl.BlockSpec((1, q_block, g_dk), lambda b, q, g: (b, q, g)),
                pl.BlockSpec((1, S, g_dk), lambda b, q, g: (b, 0, g)),
                pl.BlockSpec((1, S, g_dk), lambda b, q, g: (b, 0, g)),
                pl.BlockSpec((n_groups, g_dk, D), lambda b, q, g: (0, 0, 0)),
                pl.BlockSpec((1, D), lambda b, q, g: (0, 0)),
            ],
            out_specs=pl.BlockSpec((1, q_block, D), lambda b, q, g: (b, q, 0)),
            scratch_shapes=[pltpu.VMEM((q_block, D), jnp.float32)],
        ),
        compiler_params=pltpu.CompilerParams(
            dimension_semantics=("parallel", "parallel", "arbitrary"),
            vmem_limit_bytes=_vmem_limit(attn_bytes, cap),
        ),
    )(q_proj, k_proj, v_proj, wo, bo)

    return out


# --------------------------------------------------------------------------- #
# Pure-JAX reference (mirrors the PyTorch forward, eval mode, mask=None)
# --------------------------------------------------------------------------- #
def reference_mhsa(query, key, value, params, *, nhead):
    B, S, D = query.shape
    d_k = D // nhead
    Q = query @ params["wq"] + params["bq"]
    K = key @ params["wk"] + params["bk"]
    V = value @ params["wv"] + params["bv"]
    Q = Q.reshape(B, S, nhead, d_k).transpose(0, 2, 1, 3)
    K = K.reshape(B, S, nhead, d_k).transpose(0, 2, 1, 3)
    V = V.reshape(B, S, nhead, d_k).transpose(0, 2, 1, 3)
    scores = jnp.einsum("bhqd,bhkd->bhqk", Q, K) / math.sqrt(d_k)
    attn = jax.nn.softmax(scores, axis=-1)
    ctx = jnp.einsum("bhqk,bhkd->bhqd", attn, V)
    ctx = ctx.transpose(0, 2, 1, 3).reshape(B, S, D)
    return ctx @ params["wo"] + params["bo"]


if __name__ == "__main__":
    B, S, D, H = 2, 8, 32, 4  # batch, seq_len, d_model, nhead

    root = jax.random.PRNGKey(0)
    keys = jax.random.split(root, 12)

    # Deterministic nn.Linear-style init: weights stored pre-transposed (in, out).
    def linear_params(kw, kb):
        bound = 1.0 / math.sqrt(D)
        w = jax.random.uniform(kw, (D, D), jnp.float32, -bound, bound)
        b = jax.random.uniform(kb, (D,), jnp.float32, -bound, bound)
        return w, b

    wq, bq = linear_params(keys[0], keys[1])
    wk, bk = linear_params(keys[2], keys[3])
    wv, bv = linear_params(keys[4], keys[5])
    wo, bo = linear_params(keys[6], keys[7])
    params = dict(wq=wq, bq=bq, wk=wk, bk=bk, wv=wv, bv=bv, wo=wo, bo=bo)

    query = jax.random.normal(keys[8], (B, S, D), jnp.float32)
    key_ = jax.random.normal(keys[9], (B, S, D), jnp.float32)
    value = jax.random.normal(keys[10], (B, S, D), jnp.float32)

    # f32 MXU operands for a tight check vs. the f32 reference; pass
    # mxu_dtype=jnp.bfloat16 on v5e/v6e/v7x for ~2x MXU throughput.
    out = multi_head_self_attention(query, key_, value, params, nhead=H)
    out = jax.block_until_ready(out)

    ref = reference_mhsa(query, key_, value, params, nhead=H)
    assert out.shape == (B, S, D)
    # Tolerance accounts for the EUP approximate reciprocal in the softmax.
    assert jnp.allclose(out, ref, atol=2e-3, rtol=2e-3), float(jnp.max(jnp.abs(out - ref)))

    print("KERNEL_OK")
</pallas_src>

<mosaic_0001>
module attributes {stable_mosaic.version = 11 : i64} {
  func.func @_qkv_proj_kernel(%arg0: i32, %arg1: i32, %arg2: memref<1x8x32xf32, #tpu.memory_space<vmem>>, %arg3: memref<1x8x32xf32, #tpu.memory_space<vmem>>, %arg4: memref<1x8x32xf32, #tpu.memory_space<vmem>>, %arg5: memref<32x32xf32, #tpu.memory_space<vmem>>, %arg6: memref<32x32xf32, #tpu.memory_space<vmem>>, %arg7: memref<32x32xf32, #tpu.memory_space<vmem>>, %arg8: memref<1x32xf32, #tpu.memory_space<vmem>>, %arg9: memref<1x32xf32, #tpu.memory_space<vmem>>, %arg10: memref<1x32xf32, #tpu.memory_space<vmem>>, %arg11: memref<1x8x32xf32, #tpu.memory_space<vmem>>, %arg12: memref<1x8x32xf32, #tpu.memory_space<vmem>>, %arg13: memref<1x8x32xf32, #tpu.memory_space<vmem>>) attributes {dimension_semantics = [#tpu.dimension_semantics<parallel>, #tpu.dimension_semantics<parallel>], iteration_bounds = array<i64: 2, 1>, scalar_prefetch = 0 : i64, scratch_operands = 0 : i64, tpu.core_type = #tpu.core_type<tc>, window_params = [{transform_indices = @transform_0, window_bounds = array<i64: 1, 8, 32>}, {transform_indices = @transform_1, window_bounds = array<i64: 1, 8, 32>}, {transform_indices = @transform_2, window_bounds = array<i64: 1, 8, 32>}, {pipeline_mode = #tpu.pipeline_mode<synchronous>, transform_indices = @transform_3, window_bounds = array<i64: 32, 32>}, {pipeline_mode = #tpu.pipeline_mode<synchronous>, transform_indices = @transform_4, window_bounds = array<i64: 32, 32>}, {pipeline_mode = #tpu.pipeline_mode<synchronous>, transform_indices = @transform_5, window_bounds = array<i64: 32, 32>}, {pipeline_mode = #tpu.pipeline_mode<synchronous>, transform_indices = @transform_6, window_bounds = array<i64: 1, 32>}, {pipeline_mode = #tpu.pipeline_mode<synchronous>, transform_indices = @transform_7, window_bounds = array<i64: 1, 32>}, {pipeline_mode = #tpu.pipeline_mode<synchronous>, transform_indices = @transform_8, window_bounds = array<i64: 1, 32>}, {transform_indices = @transform_9, window_bounds = array<i64: 1, 8, 32>}, {transform_indices = @transform_10, window_bounds = array<i64: 1, 8, 32>}, {transform_indices = @transform_11, window_bounds = array<i64: 1, 8, 32>}]} {
    %c0 = arith.constant 0 : index
    %c0_0 = arith.constant 0 : index
    %c0_1 = arith.constant 0 : index
    %0 = vector.load %arg2[%c0, %c0_0, %c0_1] : memref<1x8x32xf32, #tpu.memory_space<vmem>>, vector<1x8x32xf32>
    %1 = vector.shape_cast %0 : vector<1x8x32xf32> to vector<8x32xf32>
    %c0_2 = arith.constant 0 : index
    %c0_3 = arith.constant 0 : index
    %2 = vector.load %arg5[%c0_2, %c0_3] : memref<32x32xf32, #tpu.memory_space<vmem>>, vector<32x32xf32>
    %cst = arith.constant dense<0.000000e+00> : vector<8x32xf32>
    %3 = tpu.matmul %1, %2, %cst {dimension_numbers = #tpu.dot_dimension_numbers<[1], [0], [0], [1], [0, 0, 1, 1], [], []>} : vector<8x32xf32>, vector<32x32xf32>, vector<8x32xf32> -> vector<8x32xf32>
    %c0_4 = arith.constant 0 : index
    %c0_5 = arith.constant 0 : index
    %4 = vector.load %arg8[%c0_4, %c0_5] : memref<1x32xf32, #tpu.memory_space<vmem>>, vector<1x32xf32>
    %5 = vector.broadcast %4 : vector<1x32xf32> to vector<8x32xf32>
    %6 = arith.addf %3, %5 : vector<8x32xf32>
    %cst_6 = arith.constant 0.353553385 : f32
    %7 = vector.broadcast %cst_6 : f32 to vector<8x32xf32>
    %8 = arith.mulf %6, %7 : vector<8x32xf32>
    %c0_7 = arith.constant 0 : index
    %c0_8 = arith.constant 0 : index
    %c0_9 = arith.constant 0 : index
    %9 = vector.load %arg11[%c0_7, %c0_8, %c0_9] : memref<1x8x32xf32, #tpu.memory_space<vmem>>, vector<1x8x32xf32>
    %10 = vector.shape_cast %9 : vector<1x8x32xf32> to vector<8x32xf32>
    %11 = vector.shape_cast %8 : vector<8x32xf32> to vector<1x8x32xf32>
    tpu.vector_store %arg11[%c0_7, %c0_8, %c0_9], %11 {strides = array<i32>} : memref<1x8x32xf32, #tpu.memory_space<vmem>>, vector<1x8x32xf32>,
    %c0_10 = arith.constant 0 : index
    %c0_11 = arith.constant 0 : index
    %c0_12 = arith.constant 0 : index
    %12 = vector.load %arg3[%c0_10, %c0_11, %c0_12] : memref<1x8x32xf32, #tpu.memory_space<vmem>>, vector<1x8x32xf32>
    %13 = vector.shape_cast %12 : vector<1x8x32xf32> to vector<8x32xf32>
    %c0_13 = arith.constant 0 : index
    %c0_14 = arith.constant 0 : index
    %14 = vector.load %arg6[%c0_13, %c0_14] : memref<32x32xf32, #tpu.memory_space<vmem>>, vector<32x32xf32>
    %cst_15 = arith.constant dense<0.000000e+00> : vector<8x32xf32>
    %15 = tpu.matmul %13, %14, %cst_15 {dimension_numbers = #tpu.dot_dimension_numbers<[1], [0], [0], [1], [0, 0, 1, 1], [], []>} : vector<8x32xf32>, vector<32x32xf32>, vector<8x32xf32> -> vector<8x32xf32>
    %c0_16 = arith.constant 0 : index
    %c0_17 = arith.constant 0 : index
    %16 = vector.load %arg9[%c0_16, %c0_17] : memref<1x32xf32, #tpu.memory_space<vmem>>, vector<1x32xf32>
    %17 = vector.broadcast %16 : vector<1x32xf32> to vector<8x32xf32>
    %18 = arith.addf %15, %17 : vector<8x32xf32>
    %c0_18 = arith.constant 0 : index
    %c0_19 = arith.constant 0 : index
    %c0_20 = arith.constant 0 : index
    %19 = vector.load %arg12[%c0_18, %c0_19, %c0_20] : memref<1x8x32xf32, #tpu.memory_space<vmem>>, vector<1x8x32xf32>
    %20 = vector.shape_cast %19 : vector<1x8x32xf32> to vector<8x32xf32>
    %21 = vector.shape_cast %18 : vector<8x32xf32> to vector<1x8x32xf32>
    tpu.vector_store %arg12[%c0_18, %c0_19, %c0_20], %21 {strides = array<i32>} : memref<1x8x32xf32, #tpu.memory_space<vmem>>, vector<1x8x32xf32>,
    %c0_21 = arith.constant 0 : index
    %c0_22 = arith.constant 0 : index
    %c0_23 = arith.constant 0 : index
    %22 = vector.load %arg4[%c0_21, %c0_22, %c0_23] : memref<1x8x32xf32, #tpu.memory_space<vmem>>, vector<1x8x32xf32>
    %23 = vector.shape_cast %22 : vector<1x8x32xf32> to vector<8x32xf32>
    %c0_24 = arith.constant 0 : index
    %c0_25 = arith.constant 0 : index
    %24 = vector.load %arg7[%c0_24, %c0_25] : memref<32x32xf32, #tpu.memory_space<vmem>>, vector<32x32xf32>
    %cst_26 = arith.constant dense<0.000000e+00> : vector<8x32xf32>
    %25 = tpu.matmul %23, %24, %cst_26 {dimension_numbers = #tpu.dot_dimension_numbers<[1], [0], [0], [1], [0, 0, 1, 1], [], []>} : vector<8x32xf32>, vector<32x32xf32>, vector<8x32xf32> -> vector<8x32xf32>
    %c0_27 = arith.constant 0 : index
    %c0_28 = arith.constant 0 : index
    %26 = vector.load %arg10[%c0_27, %c0_28] : memref<1x32xf32, #tpu.memory_space<vmem>>, vector<1x32xf32>
    %27 = vector.broadcast %26 : vector<1x32xf32> to vector<8x32xf32>
    %28 = arith.addf %25, %27 : vector<8x32xf32>
    %c0_29 = arith.constant 0 : index
    %c0_30 = arith.constant 0 : index
    %c0_31 = arith.constant 0 : index
    %29 = vector.load %arg13[%c0_29, %c0_30, %c0_31] : memref<1x8x32xf32, #tpu.memory_space<vmem>>, vector<1x8x32xf32>
    %30 = vector.shape_cast %29 : vector<1x8x32xf32> to vector<8x32xf32>
    %31 = vector.shape_cast %28 : vector<8x32xf32> to vector<1x8x32xf32>
    tpu.vector_store %arg13[%c0_29, %c0_30, %c0_31], %31 {strides = array<i32>} : memref<1x8x32xf32, #tpu.memory_space<vmem>>, vector<1x8x32xf32>,
    return
  }
  func.func @transform_0(%arg0: i32, %arg1: i32) -> (i32, i32, i32) {
    %c0_i32 = arith.constant 0 : i32
    %c0_i32_0 = arith.constant 0 : i32
    return %arg0, %arg1, %c0_i32 : i32, i32, i32
  }
  func.func @transform_1(%arg0: i32, %arg1: i32) -> (i32, i32, i32) {
    %c0_i32 = arith.constant 0 : i32
    %c0_i32_0 = arith.constant 0 : i32
    return %arg0, %arg1, %c0_i32 : i32, i32, i32
  }
  func.func @transform_2(%arg0: i32, %arg1: i32) -> (i32, i32, i32) {
    %c0_i32 = arith.constant 0 : i32
    %c0_i32_0 = arith.constant 0 : i32
    return %arg0, %arg1, %c0_i32 : i32, i32, i32
  }
  func.func @transform_3(%arg0: i32, %arg1: i32) -> (i32, i32) {
    %c0_i32 = arith.constant 0 : i32
    %c0_i32_0 = arith.constant 0 : i32
    %c0_i32_1 = arith.constant 0 : i32
    return %c0_i32, %c0_i32_0 : i32, i32
  }
  func.func @transform_4(%arg0: i32, %arg1: i32) -> (i32, i32) {
    %c0_i32 = arith.constant 0 : i32
    %c0_i32_0 = arith.constant 0 : i32
    %c0_i32_1 = arith.constant 0 : i32
    return %c0_i32, %c0_i32_0 : i32, i32
  }
  func.func @transform_5(%arg0: i32, %arg1: i32) -> (i32, i32) {
    %c0_i32 = arith.constant 0 : i32
    %c0_i32_0 = arith.constant 0 : i32
    %c0_i32_1 = arith.constant 0 : i32
    return %c0_i32, %c0_i32_0 : i32, i32
  }
  func.func @transform_6(%arg0: i32, %arg1: i32) -> (i32, i32) {
    %c0_i32 = arith.constant 0 : i32
    %c0_i32_0 = arith.constant 0 : i32
    %c0_i32_1 = arith.constant 0 : i32
    return %c0_i32, %c0_i32_0 : i32, i32
  }
  func.func @transform_7(%arg0: i32, %arg1: i32) -> (i32, i32) {
    %c0_i32 = arith.constant 0 : i32
    %c0_i32_0 = arith.constant 0 : i32
    %c0_i32_1 = arith.constant 0 : i32
    return %c0_i32, %c0_i32_0 : i32, i32
  }
  func.func @transform_8(%arg0: i32, %arg1: i32) -> (i32, i32) {
    %c0_i32 = arith.constant 0 : i32
    %c0_i32_0 = arith.constant 0 : i32
    %c0_i32_1 = arith.constant 0 : i32
    return %c0_i32, %c0_i32_0 : i32, i32
  }
  func.func @transform_9(%arg0: i32, %arg1: i32) -> (i32, i32, i32) {
    %c0_i32 = arith.constant 0 : i32
    %c0_i32_0 = arith.constant 0 : i32
    return %arg0, %arg1, %c0_i32 : i32, i32, i32
  }
  func.func @transform_10(%arg0: i32, %arg1: i32) -> (i32, i32, i32) {
    %c0_i32 = arith.constant 0 : i32
    %c0_i32_0 = arith.constant 0 : i32
    return %arg0, %arg1, %c0_i32 : i32, i32, i32
  }
  func.func @transform_11(%arg0: i32, %arg1: i32) -> (i32, i32, i32) {
    %c0_i32 = arith.constant 0 : i32
    %c0_i32_0 = arith.constant 0 : i32
    return %arg0, %arg1, %c0_i32 : i32, i32, i32
  }
}

</mosaic_0001>

<llo_original>
// kernel: tpu_custom_call.1
$region0: #{tpu_custom_call.1}
  #allocation0 [shape = 'u32[]', space=smem, size = 0x4, offset = 0x4, fixed_abs, tag = 'smem constant byte address 0x4 - core index']
  #allocation1 [shape = 'u32[144,128]{1,0:T(1,128)}', space=vmem, size = 0x12000, scoped, tag = 'internal scratch']
  %s0 = inlined_call_operand.hbm [shape: f32[2,8,32], index: 0, kind: input, shape index: {}]
  %s1 = inlined_call_operand.hbm [shape: f32[2,8,32], index: 1, kind: input, shape index: {}]
  %s2 = inlined_call_operand.hbm [shape: f32[2,8,32], index: 2, kind: input, shape index: {}]
  %s3 = inlined_call_operand.hbm [shape: f32[32,32], index: 3, kind: input, shape index: {}]
  %s4 = inlined_call_operand.hbm [shape: f32[32,32], index: 4, kind: input, shape index: {}]
  %s5 = inlined_call_operand.hbm [shape: f32[32,32], index: 5, kind: input, shape index: {}]
  %s6 = inlined_call_operand.vmem [shape: f32[1,32], index: 6, kind: input, shape index: {}]
  %s7 = inlined_call_operand.vmem [shape: f32[1,32], index: 7, kind: input, shape index: {}]
  %s8 = inlined_call_operand.vmem [shape: f32[1,32], index: 8, kind: input, shape index: {}]
  %s9 = inlined_call_operand.hbm [shape: f32[2,8,32], index: 9, kind: output, shape index: {0}]
  %s10 = inlined_call_operand.hbm [shape: f32[2,8,32], index: 10, kind: output, shape index: {1}]
  %s11 = inlined_call_operand.hbm [shape: f32[2,8,32], index: 11, kind: output, shape index: {2}]
  %12 = xla_tuple %s9, %s10, %s11
  %s13 = sld [smem:[#allocation0]]
  $region109: #{tpu_custom_call.1} parent=0
    _
  %s15 = ssub.s32 1, %s13
  %s16 = scalar_select 0, %s15, %s13
  $region1: #{tpu_custom_call.1} parent=0
    #allocation2 [shape = 'u8[8192]{0}', space=vmem, size = 0x2000, scoped, tag = 'input window, operand 0']
    #allocation3 [shape = 's32[2]{0}', space=sflag, size = 0x8, scoped, tag = 'scoped memory for tpu_custom_call.1']
    #allocation4 [shape = 's32[2]{0}', space=sflag, size = 0x8, scoped, tag = 'scoped memory for tpu_custom_call.1']
    #allocation5 [shape = 'u8[8192]{0}', space=vmem, size = 0x2000, scoped, tag = 'input window, operand 1']
    #allocation6 [shape = 's32[2]{0}', space=sflag, size = 0x8, scoped, tag = 'scoped memory for tpu_custom_call.1']
    #allocation7 [shape = 'u8[8192]{0}', space=vmem, size = 0x2000, scoped, tag = 'input window, operand 2']
    #allocation8 [shape = 'u8[16384]{0}', space=vmem, size = 0x4000, scoped, tag = 'input window, operand 3, single buffered']
    #allocation9 [shape = 's32[1]{0}', space=sflag, size = 0x4, scoped, tag = 'scoped memory for tpu_custom_call.1']
    #allocation10 [shape = 'u8[16384]{0}', space=vmem, size = 0x4000, scoped, tag = 'input window, operand 4, single buffered']
    #allocation11 [shape = 'u8[16384]{0}', space=vmem, size = 0x4000, scoped, tag = 'input window, operand 5, single buffered']
    #allocation12 [shape = 's32[1]{0}', space=sflag, size = 0x4, scoped, tag = 'scoped memory for tpu_custom_call.1']
    #allocation13 [shape = 'u8[8192]{0}', space=vmem, size = 0x2000, scoped, tag = 'output window, operand 0']
    #allocation14 [shape = 'u8[8192]{0}', space=vmem, size = 0x2000, scoped, tag = 'output window, operand 1']
    #allocation15 [shape = 's32[2]{0}', space=sflag, size = 0x8, scoped, tag = 'scoped memory for tpu_custom_call.1']
    #allocation16 [shape = 'u8[8192]{0}', space=vmem, size = 0x2000, scoped, tag = 'output window, operand 2']
    %17 = vsyncpa [#allocation3], 0
    %s18 = scalar_lea.sflag [#allocation3], 1
    %19 = vsyncpa %s18, 0
    %20 = vsyncpa [#allocation6], 0
    %s21 = scalar_lea.sflag [#allocation6], 1
    %22 = vsyncpa %s21, 0
    %23 = vsyncpa [#allocation9], 0
    %24 = vsyncpa [#allocation12], 0
    %25 = vsyncpa [#allocation4], 0
    %s26 = scalar_lea.sflag [#allocation4], 1
    %27 = vsyncpa %s26, 0
    %28 = vsyncpa [#allocation15], 0
    %s29 = scalar_lea.sflag [#allocation15], 1
    %30 = vsyncpa %s29, 0
    loop: start=0, step=1, limit=4
    $region2: #{tpu_custom_call.1} parent=1 // loop_pre_header
      _
    $region3: #{tpu_custom_call.1} parent=1 // loop_header
      %s32 = sphi 0, %s36
      %p33 = scmp.ge.s32.totalorder %s32, 4
      %s39 = sphi 0, %s51
      %s40 = sphi 0, %s47
      %s41 = sphi 0, %s39
      %s42 = sphi 0, %s40
      %s43 = sphi 0, %s41
      %s44 = sphi 0, %s42
      %s56 = sphi 0, %s58
      %s59 = sphi 0, %s56
      %s60 = sphi 0, %s59
      %s76 = sphi 0, %s60
      %s84 = sphi 0, %s86
      %s87 = sphi 0, %s84
      %s88 = sphi 0, %s87
      %s104 = sphi 0, %s88
      %s112 = sphi 0, %s114
      %s115 = sphi 0, %s112
      %s116 = sphi 0, %s115
      %s132 = sphi 0, %s116
      %s136 = sphi 0, %s136
      %s138 = sphi 0, %s136
      %s139 = sphi 0, %s138
      %s153 = sphi 0, %s139
      %s157 = sphi 0, %s157
      %s159 = sphi 0, %s157
      %s160 = sphi 0, %s159
      %s174 = sphi 0, %s160
      %s178 = sphi 0, %s178
      %s180 = sphi 0, %s178
      %s181 = sphi 0, %s180
      %s195 = sphi 0, %s181
      %s199 = sphi 0, %s199
      %s201 = sphi 0, %s199
      %s202 = sphi 0, %s201
      %s216 = sphi 0, %s202
      %s220 = sphi 0, %s220
      %s222 = sphi 0, %s220
      %s223 = sphi 0, %s222
      %s237 = sphi 0, %s223
      %s241 = sphi 0, %s241
      %s243 = sphi 0, %s241
      %s244 = sphi 0, %s243
      %s258 = sphi 0, %s244
      %s266 = sphi 0, %s268
      %s269 = sphi 0, %s266
      %s270 = sphi 0, %s269
      %s286 = sphi 0, %s270
      %s294 = sphi 0, %s296
      %s297 = sphi 0, %s294
      %s298 = sphi 0, %s297
      %s314 = sphi 0, %s298
      %s322 = sphi 0, %s324
      %s325 = sphi 0, %s322
      %s326 = sphi 0, %s325
      %s342 = sphi 0, %s326
    $region4: #{tpu_custom_call.1} parent=1 // loop_header_branch
      %35 = sbr.rel (%p33) target = $region8
    $region5: #{tpu_custom_call.1} parent=1 // loop_body
      %s37 = ssub.s32 %s32, 1
      %s38 = ssub.s32 %s32, 2
      %s45 = sadd.s32 1, %s40
      %p46 = scmp.ge.s32.totalorder %s45, 1
      %s47 = scalar_select %p46, 0, %s45
      %s48 = sadd.s32 1, %s39
      %s49 = scalar_select %p46, %s48, %s39
      %p50 = scmp.ge.s32.totalorder %s49, 2
      %s51 = scalar_select %p50, 0, %s49
      %s52 = ssub.s32 %s39, %s51
      %s53 = ssub.s32 %s40, %s47
      %s54 = sor.u32 %s52, %s53
      %p55 = scmp.eq.s32.totalorder %s54, 0
      %s57 = sadd.s32 %s56, 1
      %s58 = scalar_select %p55, %s56, %s57
      %p61 = pneg %p55
      %p62 = scmp.eq.s32.totalorder %s32, 1
      %p63 = por %p61, %p62
      %p64 = scmp.ne.s32.totalorder %s56, %s59
      %p65 = scmp.eq.s32.totalorder %s32, 0
      %p66 = por %p64, %p65
      %p67 = scmp.ne.s32.totalorder %s56, %s59
      %p68 = scmp.eq.s32.totalorder %s37, 1
      %p69 = por %p67, %p68
      %p70 = scmp.ne.s32.totalorder %s59, %s60
      %p71 = scmp.eq.s32.totalorder %s37, 0
      %p72 = por %p70, %p71
      %p73 = scmp.ne.s32.totalorder %s59, %s60
      %p74 = scmp.eq.s32.totalorder %s38, 1
      %p75 = por %p73, %p74
      %p77 = scmp.ne.s32.totalorder %s60, %s76
      %p78 = scmp.eq.s32.totalorder %s38, 0
      %p79 = por %p77, %p78
      %s80 = ssub.s32 %s39, %s51
      %s81 = ssub.s32 %s40, %s47
      %s82 = sor.u32 %s80, %s81
      %p83 = scmp.eq.s32.totalorder %s82, 0
      %s85 = sadd.s32 %s84, 1
      %s86 = scalar_select %p83, %s84, %s85
      %p89 = pneg %p83
      %p90 = scmp.eq.s32.totalorder %s32, 1
      %p91 = por %p89, %p90
      %p92 = scmp.ne.s32.totalorder %s84, %s87
      %p93 = scmp.eq.s32.totalorder %s32, 0
      %p94 = por %p92, %p93
      %p95 = scmp.ne.s32.totalorder %s84, %s87
      %p96 = scmp.eq.s32.totalorder %s37, 1
      %p97 = por %p95, %p96
      %p98 = scmp.ne.s32.totalorder %s87, %s88
      %p99 = scmp.eq.s32.totalorder %s37, 0
      %p100 = por %p98, %p99
      %p101 = scmp.ne.s32.totalorder %s87, %s88
      %p102 = scmp.eq.s32.totalorder %s38, 1
      %p103 = por %p101, %p102
      %p105 = scmp.ne.s32.totalorder %s88, %s104
      %p106 = scmp.eq.s32.totalorder %s38, 0
      %p107 = por %p105, %p106
      %s108 = ssub.s32 %s39, %s51
      %s109 = ssub.s32 %s40, %s47
      %s110 = sor.u32 %s108, %s109
      %p111 = scmp.eq.s32.totalorder %s110, 0
      %s113 = sadd.s32 %s112, 1
      %s114 = scalar_select %p111, %s112, %s113
      %p117 = pneg %p111
      %p118 = scmp.eq.s32.totalorder %s32, 1
      %p119 = por %p117, %p118
      %p120 = scmp.ne.s32.totalorder %s112, %s115
      %p121 = scmp.eq.s32.totalorder %s32, 0
      %p122 = por %p120, %p121
      %p123 = scmp.ne.s32.totalorder %s112, %s115
      %p124 = scmp.eq.s32.totalorder %s37, 1
      %p125 = por %p123, %p124
      %p126 = scmp.ne.s32.totalorder %s115, %s116
      %p127 = scmp.eq.s32.totalorder %s37, 0
      %p128 = por %p126, %p127
      %p129 = scmp.ne.s32.totalorder %s115, %s116
      %p130 = scmp.eq.s32.totalorder %s38, 1
      %p131 = por %p129, %p130
      %p133 = scmp.ne.s32.totalorder %s116, %s132
      %p134 = scmp.eq.s32.totalorder %s38, 0
      %p135 = por %p133, %p134
      %s137 = sadd.s32 %s136, 1
      %p140 = scmp.eq.s32.totalorder %s32, 1
      %p141 = scmp.ne.s32.totalorder %s136, %s138
      %p142 = scmp.eq.s32.totalorder %s32, 0
      %p143 = por %p141, %p142
      %p144 = scmp.ne.s32.totalorder %s136, %s138
      %p145 = scmp.eq.s32.totalorder %s37, 1
      %p146 = por %p144, %p145
      %p147 = scmp.ne.s32.totalorder %s138, %s139
      %p148 = scmp.eq.s32.totalorder %s37, 0
      %p149 = por %p147, %p148
      %p150 = scmp.ne.s32.totalorder %s138, %s139
      %p151 = scmp.eq.s32.totalorder %s38, 1
      %p152 = por %p150, %p151
      %p154 = scmp.ne.s32.totalorder %s139, %s153
      %p155 = scmp.eq.s32.totalorder %s38, 0
      %p156 = por %p154, %p155
      %s158 = sadd.s32 %s157, 1
      %p161 = scmp.eq.s32.totalorder %s32, 1
      %p162 = scmp.ne.s32.totalorder %s157, %s159
      %p163 = scmp.eq.s32.totalorder %s32, 0
      %p164 = por %p162, %p163
      %p165 = scmp.ne.s32.totalorder %s157, %s159
      %p166 = scmp.eq.s32.totalorder %s37, 1
      %p167 = por %p165, %p166
      %p168 = scmp.ne.s32.totalorder %s159, %s160
      %p169 = scmp.eq.s32.totalorder %s37, 0
      %p170 = por %p168, %p169
      %p171 = scmp.ne.s32.totalorder %s159, %s160
      %p172 = scmp.eq.s32.totalorder %s38, 1
      %p173 = por %p171, %p172
      %p175 = scmp.ne.s32.totalorder %s160, %s174
      %p176 = scmp.eq.s32.totalorder %s38, 0
      %p177 = por %p175, %p176
      %s179 = sadd.s32 %s178, 1
      %p182 = scmp.eq.s32.totalorder %s32, 1
      %p183 = scmp.ne.s32.totalorder %s178, %s180
      %p184 = scmp.eq.s32.totalorder %s32, 0
      %p185 = por %p183, %p184
      %p186 = scmp.ne.s32.totalorder %s178, %s180
      %p187 = scmp.eq.s32.totalorder %s37, 1
      %p188 = por %p186, %p187
      %p189 = scmp.ne.s32.totalorder %s180, %s181
      %p190 = scmp.eq.s32.totalorder %s37, 0
      %p191 = por %p189, %p190
      %p192 = scmp.ne.s32.totalorder %s180, %s181
      %p193 = scmp.eq.s32.totalorder %s38, 1
      %p194 = por %p192, %p193
      %p196 = scmp.ne.s32.totalorder %s181, %s195
      %p197 = scmp.eq.s32.totalorder %s38, 0
      %p198 = por %p196, %p197
      %s200 = sadd.s32 %s199, 1
      %p203 = scmp.eq.s32.totalorder %s32, 1
      %p204 = scmp.ne.s32.totalorder %s199, %s201
      %p205 = scmp.eq.s32.totalorder %s32, 0
      %p206 = por %p204, %p205
      %p207 = scmp.ne.s32.totalorder %s199, %s201
      %p208 = scmp.eq.s32.totalorder %s37, 1
      %p209 = por %p207, %p208
      %p210 = scmp.ne.s32.totalorder %s201, %s202
      %p211 = scmp.eq.s32.totalorder %s37, 0
      %p212 = por %p210, %p211
      %p213 = scmp.ne.s32.totalorder %s201, %s202
      %p214 = scmp.eq.s32.totalorder %s38, 1
      %p215 = por %p213, %p214
      %p217 = scmp.ne.s32.totalorder %s202, %s216
      %p218 = scmp.eq.s32.totalorder %s38, 0
      %p219 = por %p217, %p218
      %s221 = sadd.s32 %s220, 1
      %p224 = scmp.eq.s32.totalorder %s32, 1
      %p225 = scmp.ne.s32.totalorder %s220, %s222
      %p226 = scmp.eq.s32.totalorder %s32, 0
      %p227 = por %p225, %p226
      %p228 = scmp.ne.s32.totalorder %s220, %s222
      %p229 = scmp.eq.s32.totalorder %s37, 1
      %p230 = por %p228, %p229
      %p231 = scmp.ne.s32.totalorder %s222, %s223
      %p232 = scmp.eq.s32.totalorder %s37, 0
      %p233 = por %p231, %p232
      %p234 = scmp.ne.s32.totalorder %s222, %s223
      %p235 = scmp.eq.s32.totalorder %s38, 1
      %p236 = por %p234, %p235
      %p238 = scmp.ne.s32.totalorder %s223, %s237
      %p239 = scmp.eq.s32.totalorder %s38, 0
      %p240 = por %p238, %p239
      %s242 = sadd.s32 %s241, 1
      %p245 = scmp.eq.s32.totalorder %s32, 1
      %p246 = scmp.ne.s32.totalorder %s241, %s243
      %p247 = scmp.eq.s32.totalorder %s32, 0
      %p248 = por %p246, %p247
      %p249 = scmp.ne.s32.totalorder %s241, %s243
      %p250 = scmp.eq.s32.totalorder %s37, 1
      %p251 = por %p249, %p250
      %p252 = scmp.ne.s32.totalorder %s243, %s244
      %p253 = scmp.eq.s32.totalorder %s37, 0
      %p254 = por %p252, %p253
      %p255 = scmp.ne.s32.totalorder %s243, %s244
      %p256 = scmp.eq.s32.totalorder %s38, 1
      %p257 = por %p255, %p256
      %p259 = scmp.ne.s32.totalorder %s244, %s258
      %p260 = scmp.eq.s32.totalorder %s38, 0
      %p261 = por %p259, %p260
      %s262 = ssub.s32 %s39, %s51
      %s263 = ssub.s32 %s40, %s47
      %s264 = sor.u32 %s262, %s263
      %p265 = scmp.eq.s32.totalorder %s264, 0
      %s267 = sadd.s32 %s266, 1
      %s268 = scalar_select %p265, %s266, %s267
      %p271 = pneg %p265
      %p272 = scmp.eq.s32.totalorder %s32, 1
      %p273 = por %p271, %p272
      %p274 = scmp.ne.s32.totalorder %s266, %s269
      %p275 = scmp.eq.s32.totalorder %s32, 0
      %p276 = por %p274, %p275
      %p277 = scmp.ne.s32.totalorder %s266, %s269
      %p278 = scmp.eq.s32.totalorder %s37, 1
      %p279 = por %p277, %p278
      %p280 = scmp.ne.s32.totalorder %s269, %s270
      %p281 = scmp.eq.s32.totalorder %s37, 0
      %p282 = por %p280, %p281
      %p283 = scmp.ne.s32.totalorder %s269, %s270
      %p284 = scmp.eq.s32.totalorder %s38, 1
      %p285 = por %p283, %p284
      %p287 = scmp.ne.s32.totalorder %s270, %s286
      %p288 = scmp.eq.s32.totalorder %s38, 0
      %p289 = por %p287, %p288
      %s290 = ssub.s32 %s39, %s51
      %s291 = ssub.s32 %s40, %s47
      %s292 = sor.u32 %s290, %s291
      %p293 = scmp.eq.s32.totalorder %s292, 0
      %s295 = sadd.s32 %s294, 1
      %s296 = scalar_select %p293, %s294, %s295
      %p299 = pneg %p293
      %p300 = scmp.eq.s32.totalorder %s32, 1
      %p301 = por %p299, %p300
      %p302 = scmp.ne.s32.totalorder %s294, %s297
      %p303 = scmp.eq.s32.totalorder %s32, 0
      %p304 = por %p302, %p303
      %p305 = scmp.ne.s32.totalorder %s294, %s297
      %p306 = scmp.eq.s32.totalorder %s37, 1
      %p307 = por %p305, %p306
      %p308 = scmp.ne.s32.totalorder %s297, %s298
      %p309 = scmp.eq.s32.totalorder %s37, 0
      %p310 = por %p308, %p309
      %p311 = scmp.ne.s32.totalorder %s297, %s298
      %p312 = scmp.eq.s32.totalorder %s38, 1
      %p313 = por %p311, %p312
      %p315 = scmp.ne.s32.totalorder %s298, %s314
      %p316 = scmp.eq.s32.totalorder %s38, 0
      %p317 = por %p315, %p316
      %s318 = ssub.s32 %s39, %s51
      %s319 = ssub.s32 %s40, %s47
      %s320 = sor.u32 %s318, %s319
      %p321 = scmp.eq.s32.totalorder %s320, 0
      %s323 = sadd.s32 %s322, 1
      %s324 = scalar_select %p321, %s322, %s323
      %p327 = pneg %p321
      %p328 = scmp.eq.s32.totalorder %s32, 1
      %p329 = por %p327, %p328
      %p330 = scmp.ne.s32.totalorder %s322, %s325
      %p331 = scmp.eq.s32.totalorder %s32, 0
      %p332 = por %p330, %p331
      %p333 = scmp.ne.s32.totalorder %s322, %s325
      %p334 = scmp.eq.s32.totalorder %s37, 1
      %p335 = por %p333, %p334
      %p336 = scmp.ne.s32.totalorder %s325, %s326
      %p337 = scmp.eq.s32.totalorder %s37, 0
      %p338 = por %p336, %p337
      %p339 = scmp.ne.s32.totalorder %s325, %s326
      %p340 = scmp.eq.s32.totalorder %s38, 1
      %p341 = por %p339, %p340
      %p343 = scmp.ne.s32.totalorder %s326, %s342
      %p344 = scmp.eq.s32.totalorder %s38, 0
      %p345 = por %p343, %p344
      %p346 = scmp.le.s32.totalorder 1, %s32
      %p347 = scmp.lt.s32.totalorder %s32, 3
      %p348 = pnand %p346, %p347
      %p349 = pneg %p348
      // Predicated region
      $region9: #{tpu_custom_call.1} parent=5 // pred_check
        _
      $region10: #{tpu_custom_call.1} parent=5 // pred_check_branch
        %351 = sbr.rel (%p348) target = $region12
      $region11: #{tpu_custom_call.1} parent=5 // pred_region
        %s352 = ssub.s32 %s32, 1
        // Predicated region
        $region13: #{tpu_custom_call.1} parent=11 // pred_check
          %p353 = pneg %p149
        $region14: #{tpu_custom_call.1} parent=11 // pred_check_branch
          %355 = sbr.rel (%p353) target = $region16
        $region15: #{tpu_custom_call.1} parent=11 // pred_region
          %s357 = ssub.s32 512, 512
          %358 = vsyncadd [#allocation9], %s357
          %s359 = sshll.u32 [#allocation8], 4
          %s360 = int_to_ptr.vmem [resolvable:$true] %s359
          %365 = dma.hbm_to_vmem [thread:$0]  %s3, 512, %s360, [#allocation9], 128, 128, 8
        $region16: #{tpu_custom_call.1} parent=11 // pred_fallthru
          _
        // Predicated region
        $region17: #{tpu_custom_call.1} parent=11 // pred_check
          %p366 = pneg %p170
        $region18: #{tpu_custom_call.1} parent=11 // pred_check_branch
          %368 = sbr.rel (%p366) target = $region20
        $region19: #{tpu_custom_call.1} parent=11 // pred_region
          %s370 = ssub.s32 512, 512
          %371 = vsyncadd [#allocation9], %s370
          %s372 = sshll.u32 [#allocation10], 4
          %s373 = int_to_ptr.vmem [resolvable:$true] %s372
          %378 = dma.hbm_to_vmem [thread:$0]  %s4, 512, %s373, [#allocation9], 128, 128, 8
        $region20: #{tpu_custom_call.1} parent=11 // pred_fallthru
          _
        // Predicated region
        $region21: #{tpu_custom_call.1} parent=11 // pred_check
          %p379 = pneg %p191
        $region22: #{tpu_custom_call.1} parent=11 // pred_check_branch
          %381 = sbr.rel (%p379) target = $region24
        $region23: #{tpu_custom_call.1} parent=11 // pred_region
          %s383 = ssub.s32 512, 512
          %384 = vsyncadd [#allocation12], %s383
          %s385 = sshll.u32 [#allocation11], 4
          %s386 = int_to_ptr.vmem [resolvable:$true] %s385
          %391 = dma.hbm_to_vmem [thread:$0]  %s5, 512, %s386, [#allocation12], 128, 128, 8
        $region24: #{tpu_custom_call.1} parent=11 // pred_fallthru
          _
        // Predicated region
        $region25: #{tpu_custom_call.1} parent=11 // pred_check
          %p392 = pneg %p212
        $region26: #{tpu_custom_call.1} parent=11 // pred_check_branch
          %394 = sbr.rel (%p392) target = $region28
        $region27: #{tpu_custom_call.1} parent=11 // pred_region
          _
        $region28: #{tpu_custom_call.1} parent=11 // pred_fallthru
          _
        // Predicated region
        $region29: #{tpu_custom_call.1} parent=11 // pred_check
          %p395 = pneg %p233
        $region30: #{tpu_custom_call.1} parent=11 // pred_check_branch
          %397 = sbr.rel (%p395) target = $region32
        $region31: #{tpu_custom_call.1} parent=11 // pred_region
          _
        $region32: #{tpu_custom_call.1} parent=11 // pred_fallthru
          _
        // Predicated region
        $region33: #{tpu_custom_call.1} parent=11 // pred_check
          %p398 = pneg %p254
        $region34: #{tpu_custom_call.1} parent=11 // pred_check_branch
          %400 = sbr.rel (%p398) target = $region36
        $region35: #{tpu_custom_call.1} parent=11 // pred_region
          _
        $region36: #{tpu_custom_call.1} parent=11 // pred_fallthru
          _
      $region12: #{tpu_custom_call.1} parent=5 // pred_fallthru
        _
      %p401 = scmp.lt.s32.totalorder %s32, 2
      // Predicated region
      $region37: #{tpu_custom_call.1} parent=5 // pred_check
        %p402 = pneg %p401
      $region38: #{tpu_custom_call.1} parent=5 // pred_check_branch
        %404 = sbr.rel (%p402) target = $region40
      $region39: #{tpu_custom_call.1} parent=5 // pred_region
        // Predicated region
        $region41: #{tpu_custom_call.1} parent=39 // pred_check
          %p405 = pneg %p66
        $region42: #{tpu_custom_call.1} parent=39 // pred_check_branch
          %407 = sbr.rel (%p405) target = $region44
        $region43: #{tpu_custom_call.1} parent=39 // pred_region
          %s408 = sand.u32 %s56, 1
          %s409 = scalar_lea.sflag [#allocation3], %s408
          %s410 = sand.u32 %s56, 1
          %s411 = smul.addr %s410, 8
          %s412 = scalar_lea.vmem [#allocation2], %s411
          %s414 = ssub.s32 128, 128
          %415 = vsyncadd %s409, %s414
          %s416 = sadd.s32 %s40, %s39
          %s417 = smul.addr %s416, 128
          %s418 = scalar_lea.hbm %s0, %s417
          %s420 = sshll.u32 %s412, 4
          %s421 = int_to_ptr.vmem [resolvable:$true] %s420
          %423 = dma.hbm_to_vmem [thread:$0]  %s418, 128, %s421, %s409
        $region44: #{tpu_custom_call.1} parent=39 // pred_fallthru
          _
        // Predicated region
        $region45: #{tpu_custom_call.1} parent=39 // pred_check
          %p424 = pneg %p94
        $region46: #{tpu_custom_call.1} parent=39 // pred_check_branch
          %426 = sbr.rel (%p424) target = $region48
        $region47: #{tpu_custom_call.1} parent=39 // pred_region
          %s427 = sand.u32 %s32, 1
          %s428 = scalar_lea.sflag [#allocation6], %s427
          %s429 = sand.u32 %s84, 1
          %s430 = smul.addr %s429, 8
          %s431 = scalar_lea.vmem [#allocation5], %s430
          %s433 = ssub.s32 128, 128
          %434 = vsyncadd %s428, %s433
          %s435 = sadd.s32 %s40, %s39
          %s436 = smul.addr %s435, 128
          %s437 = scalar_lea.hbm %s1, %s436
          %s439 = sshll.u32 %s431, 4
          %s440 = int_to_ptr.vmem [resolvable:$true] %s439
          %442 = dma.hbm_to_vmem [thread:$0]  %s437, 128, %s440, %s428
        $region48: #{tpu_custom_call.1} parent=39 // pred_fallthru
          _
        // Predicated region
        $region49: #{tpu_custom_call.1} parent=39 // pred_check
          %p443 = pneg %p122
        $region50: #{tpu_custom_call.1} parent=39 // pred_check_branch
          %445 = sbr.rel (%p443) target = $region52
        $region51: #{tpu_custom_call.1} parent=39 // pred_region
          %s446 = sand.u32 %s32, 1
          %s447 = scalar_lea.sflag [#allocation6], %s446
          %s448 = sand.u32 %s112, 1
          %s449 = smul.addr %s448, 8
          %s450 = scalar_lea.vmem [#allocation7], %s449
          %s452 = ssub.s32 128, 128
          %453 = vsyncadd %s447, %s452
          %s454 = sadd.s32 %s40, %s39
          %s455 = smul.addr %s454, 128
          %s456 = scalar_lea.hbm %s2, %s455
          %s458 = sshll.u32 %s450, 4
          %s459 = int_to_ptr.vmem [resolvable:$true] %s458
          %461 = dma.hbm_to_vmem [thread:$0]  %s456, 128, %s459, %s447
        $region52: #{tpu_custom_call.1} parent=39 // pred_fallthru
          _
      $region40: #{tpu_custom_call.1} parent=5 // pred_fallthru
        _
      %p462 = scmp.le.s32.totalorder 1, %s32
      %p463 = scmp.lt.s32.totalorder %s32, 3
      %p464 = pnand %p462, %p463
      %p465 = pneg %p464
      // Predicated region
      $region53: #{tpu_custom_call.1} parent=5 // pred_check
        _
      $region54: #{tpu_custom_call.1} parent=5 // pred_check_branch
        %467 = sbr.rel (%p464) target = $region56
      $region55: #{tpu_custom_call.1} parent=5 // pred_region
        %s468 = ssub.s32 %s32, 1
        %s469 = sand.u32 %s59, 1
        %s470 = scalar_lea.sflag [#allocation3], %s469
        %s471 = sand.u32 %s59, 1
        %s472 = smul.addr %s471, 8
        %s473 = scalar_lea.vmem [#allocation2], %s472
        // Predicated region
        $region57: #{tpu_custom_call.1} parent=55 // pred_check
          %p474 = pneg %p72
        $region58: #{tpu_custom_call.1} parent=55 // pred_check_branch
          %476 = sbr.rel (%p474) target = $region60
        $region59: #{tpu_custom_call.1} parent=55 // pred_region
          %477 = dma.done %s470, 128
        $region60: #{tpu_custom_call.1} parent=55 // pred_fallthru
          _
        %s478 = sand.u32 %s37, 1
        %s479 = scalar_lea.sflag [#allocation6], %s478
        %s480 = sand.u32 %s87, 1
        %s481 = smul.addr %s480, 8
        %s482 = scalar_lea.vmem [#allocation5], %s481
        // Predicated region
        $region61: #{tpu_custom_call.1} parent=55 // pred_check
          %p483 = pneg %p100
        $region62: #{tpu_custom_call.1} parent=55 // pred_check_branch
          %485 = sbr.rel (%p483) target = $region64
        $region63: #{tpu_custom_call.1} parent=55 // pred_region
          %486 = dma.done %s479, 128
        $region64: #{tpu_custom_call.1} parent=55 // pred_fallthru
          _
        %s487 = sand.u32 %s37, 1
        %s488 = scalar_lea.sflag [#allocation6], %s487
        %s489 = sand.u32 %s115, 1
        %s490 = smul.addr %s489, 8
        %s491 = scalar_lea.vmem [#allocation7], %s490
        // Predicated region
        $region65: #{tpu_custom_call.1} parent=55 // pred_check
          %p492 = pneg %p128
        $region66: #{tpu_custom_call.1} parent=55 // pred_check_branch
          %494 = sbr.rel (%p492) target = $region68
        $region67: #{tpu_custom_call.1} parent=55 // pred_region
          %495 = dma.done %s488, 128
        $region68: #{tpu_custom_call.1} parent=55 // pred_fallthru
          _
        // Predicated region
        $region69: #{tpu_custom_call.1} parent=55 // pred_check
          %p496 = pneg %p149
        $region70: #{tpu_custom_call.1} parent=55 // pred_check_branch
          %498 = sbr.rel (%p496) target = $region72
        $region71: #{tpu_custom_call.1} parent=55 // pred_region
          %499 = dma.done [#allocation9], 512
        $region72: #{tpu_custom_call.1} parent=55 // pred_fallthru
          _
        // Predicated region
        $region73: #{tpu_custom_call.1} parent=55 // pred_check
          %p500 = pneg %p170
        $region74: #{tpu_custom_call.1} parent=55 // pred_check_branch
          %502 = sbr.rel (%p500) target = $region76
        $region75: #{tpu_custom_call.1} parent=55 // pred_region
          %503 = dma.done [#allocation9], 512
        $region76: #{tpu_custom_call.1} parent=55 // pred_fallthru
          _
        // Predicated region
        $region77: #{tpu_custom_call.1} parent=55 // pred_check
          %p504 = pneg %p191
        $region78: #{tpu_custom_call.1} parent=55 // pred_check_branch
          %506 = sbr.rel (%p504) target = $region80
        $region79: #{tpu_custom_call.1} parent=55 // pred_region
          %507 = dma.done [#allocation12], 512
        $region80: #{tpu_custom_call.1} parent=55 // pred_fallthru
          _
        %s508 = sand.u32 %s59, 1
        %s509 = scalar_lea.sflag [#allocation3], %s508
        %s510 = sand.u32 %s59, 1
        %s511 = smul.addr %s510, 8
        %s512 = scalar_lea.vmem [#allocation2], %s511
        %p513 = pneg %p72
        %p514 = pneg %p69
        %s515 = sand.u32 %s37, 1
        %s516 = scalar_lea.sflag [#allocation6], %s515
        %s517 = sand.u32 %s87, 1
        %s518 = smul.addr %s517, 8
        %s519 = scalar_lea.vmem [#allocation5], %s518
        %p520 = pneg %p100
        %p521 = pneg %p97
        %s522 = sand.u32 %s37, 1
        %s523 = scalar_lea.sflag [#allocation6], %s522
        %s524 = sand.u32 %s115, 1
        %s525 = smul.addr %s524, 8
        %s526 = scalar_lea.vmem [#allocation7], %s525
        %p527 = pneg %p128
        %p528 = pneg %p125
        %p529 = pneg %p149
        %p530 = pneg %p146
        %p531 = pneg %p170
        %p532 = pneg %p167
        %p533 = pneg %p191
        %p534 = pneg %p188
        %p535 = pneg %p212
        %p536 = pneg %p209
        %p537 = pneg %p233
        %p538 = pneg %p230
        %p539 = pneg %p254
        %p540 = pneg %p251
        %p541 = pneg %p282
        %p542 = pneg %p279
        %s543 = sand.u32 %s269, 1
        %s544 = scalar_lea.sflag [#allocation4], %s543
        %s545 = sand.u32 %s269, 1
        %s546 = smul.addr %s545, 8
        %s547 = scalar_lea.vmem [#allocation13], %s546
        %p548 = pneg %p310
        %p549 = pneg %p307
        %s550 = sand.u32 %s37, 1
        %s551 = scalar_lea.sflag [#allocation15], %s550
        %s552 = sand.u32 %s297, 1
        %s553 = smul.addr %s552, 8
        %s554 = scalar_lea.vmem [#allocation14], %s553
        %p555 = pneg %p338
        %p556 = pneg %p335
        %s557 = sand.u32 %s37, 1
        %s558 = scalar_lea.sflag [#allocation15], %s557
        %s559 = sand.u32 %s325, 1
        %s560 = smul.addr %s559, 8
        %s561 = scalar_lea.vmem [#allocation16], %s560
        %v562 = vld [vmem:[%s473] sm:$0xff]
        %v563 = vld [vmem:[#allocation8] sm:$0xff]
        %v564 = vld [vmem:[#allocation8 + $0x8] sm:$0xff]
        %v565 = vld [vmem:[#allocation8 + $0x10] sm:$0xff]
        %v566 = vld [vmem:[#allocation8 + $0x18] sm:$0xff]
        %v567 = vld [vmem:[%s6] sm:$0x1]
        %v569 = vlaneseq
        %v570 = vshrl.u32 %v569, 7
        %v571 = vsub.s32 0, %v570
        %v572 = vrot.slane %v567, %v571
        %vm574 = vcmask 261120
        %v576 = vsel %vm574, %v562, 0
        %578 = vmatprep.subr.mxu0 0.0
        %579 = vmatpush1.msra.mxu0 %v563
        %580 = vmatprep.subr.mxu0 0.0
        %581 = vmatpush1.msra.mxu0 %v564
        %582 = vmatprep.subr.mxu0 0.0
        %583 = vmatpush1.msra.mxu0 %v565
        %584 = vmatprep.subr.mxu0 0.0
        %585 = vmatpush1.msra.mxu0 %v566
        %586 = vmatprep.subr.mxu0 0.0
        %587 = vmatpush1.msra.mxu0 0.0
        %588 = vmatprep.subr.mxu0 0.0
        %589 = vmatpush1.msra.mxu0 0.0
        %590 = vmatprep.subr.mxu0 0.0
        %591 = vmatpush1.msra.mxu0 0.0
        %592 = vmatprep.subr.mxu0 0.0
        %593 = vmatpush1.msra.mxu0 0.0
        %594 = vmatprep.subr.mxu0 0.0
        %595 = vmatpush1.msra.mxu0 0.0
        %596 = vmatprep.subr.mxu0 0.0
        %597 = vmatpush1.msra.mxu0 0.0
        %598 = vmatprep.subr.mxu0 0.0
        %599 = vmatpush1.msra.mxu0 0.0
        %600 = vmatprep.subr.mxu0 0.0
        %601 = vmatpush1.msra.mxu0 0.0
        %602 = vmatprep.subr.mxu0 0.0
        %603 = vmatpush1.msra.mxu0 0.0
        %604 = vmatprep.subr.mxu0 0.0
        %605 = vmatpush1.msra.mxu0 0.0
        %606 = vmatprep.subr.mxu0 0.0
        %607 = vmatpush1.msra.mxu0 0.0
        %608 = vmatprep.subr.mxu0 0.0
        %609 = vmatpush1.msra.mxu0 0.0
        %610 = vmatprep.subr.mxu0 0.0
        %611 = vmatpush1.msra.mxu0 0.0
        %612 = vmatprep.subr.mxu0 0.0
        %613 = vmatpush1.msra.mxu0 0.0
        %614 = vmatprep.subr.mxu0 0.0
        %615 = vmatpush1.msra.mxu0 0.0
        %616 = vmatprep.subr.mxu0 0.0
        %617 = vmatpush1.msra.mxu0 0.0
        %618 = vmatprep.subr.mxu0 0.0
        %619 = vmatpush1.msra.mxu0 0.0
        %620 = vmatprep.subr.mxu0 0.0
        %621 = vmatpush1.msra.mxu0 0.0
        %622 = vmatprep.subr.mxu0 0.0
        %623 = vmatpush1.msra.mxu0 0.0
        %624 = vmatprep.subr.mxu0 0.0
        %625 = vmatpush1.msra.mxu0 0.0
        %626 = vmatprep.subr.mxu0 0.0
        %627 = vmatpush1.msra.mxu0 0.0
        %628 = vmatprep.subr.mxu0 0.0
        %629 = vmatpush1.msra.mxu0 0.0
        %630 = vmatprep.subr.mxu0 0.0
        %631 = vmatpush1.msra.mxu0 0.0
        %632 = vmatprep.subr.mxu0 0.0
        %633 = vmatpush1.msra.mxu0 0.0
        %634 = vmatprep.subr.mxu0 0.0
        %635 = vmatpush1.msra.mxu0 0.0
        %636 = vmatprep.subr.mxu0 0.0
        %637 = vmatpush1.msra.mxu0 0.0
        %638 = vmatprep.subr.mxu0 0.0
        %639 = vmatpush1.msra.mxu0 0.0
        %640 = vmatprep.subr.mxu0 0.0
        %641 = vmatpush1.msra.mxu0 0.0
        %642 = vmatprep.mubr.f32.mxu0 0.0
        %643 = vmatmul.mubr.f32.gmra.mrb[0].mxu0 %v576
        %v644 = vpop.f32.mrb[0].mxu0
        %v645 = vadd.f32 %v572, %v644
        %v646 = vpop.f32.mrb[0].mxu0
        %647 = vdwg.mxu0
        %v648 = vmul.f32 %v645, 0.35355338
        %649 = vst.msk [vmem:[%s547] sm:$0xff] %vm574, %v648
        %v650 = vld [vmem:[%s482] sm:$0xff]
        %v651 = vld [vmem:[#allocation10] sm:$0xff]
        %v652 = vld [vmem:[#allocation10 + $0x8] sm:$0xff]
        %v653 = vld [vmem:[#allocation10 + $0x10] sm:$0xff]
        %v654 = vld [vmem:[#allocation10 + $0x18] sm:$0xff]
        %v655 = vld [vmem:[%s7] sm:$0x1]
        %v657 = vlaneseq
        %v658 = vshrl.u32 %v657, 7
        %v659 = vsub.s32 0, %v658
        %v660 = vrot.slane %v655, %v659
        %v663 = vsel %vm574, %v650, 0
        %665 = vmatprep.subr.mxu0 0.0
        %666 = vmatpush1.msra.mxu0 %v651
        %667 = vmatprep.subr.mxu0 0.0
        %668 = vmatpush1.msra.mxu0 %v652
        %669 = vmatprep.subr.mxu0 0.0
        %670 = vmatpush1.msra.mxu0 %v653
        %671 = vmatprep.subr.mxu0 0.0
        %672 = vmatpush1.msra.mxu0 %v654
        %673 = vmatprep.subr.mxu0 0.0
        %674 = vmatpush1.msra.mxu0 0.0
        %675 = vmatprep.subr.mxu0 0.0
        %676 = vmatpush1.msra.mxu0 0.0
        %677 = vmatprep.subr.mxu0 0.0
        %678 = vmatpush1.msra.mxu0 0.0
        %679 = vmatprep.subr.mxu0 0.0
        %680 = vmatpush1.msra.mxu0 0.0
        %681 = vmatprep.subr.mxu0 0.0
        %682 = vmatpush1.msra.mxu0 0.0
        %683 = vmatprep.subr.mxu0 0.0
        %684 = vmatpush1.msra.mxu0 0.0
        %685 = vmatprep.subr.mxu0 0.0
        %686 = vmatpush1.msra.mxu0 0.0
        %687 = vmatprep.subr.mxu0 0.0
        %688 = vmatpush1.msra.mxu0 0.0
        %689 = vmatprep.subr.mxu0 0.0
        %690 = vmatpush1.msra.mxu0 0.0
        %691 = vmatprep.subr.mxu0 0.0
        %692 = vmatpush1.msra.mxu0 0.0
        %693 = vmatprep.subr.mxu0 0.0
        %694 = vmatpush1.msra.mxu0 0.0
        %695 = vmatprep.subr.mxu0 0.0
        %696 = vmatpush1.msra.mxu0 0.0
        %697 = vmatprep.subr.mxu0 0.0
        %698 = vmatpush1.msra.mxu0 0.0
        %699 = vmatprep.subr.mxu0 0.0
        %700 = vmatpush1.msra.mxu0 0.0
        %701 = vmatprep.subr.mxu0 0.0
        %702 = vmatpush1.msra.mxu0 0.0
        %703 = vmatprep.subr.mxu0 0.0
        %704 = vmatpush1.msra.mxu0 0.0
        %705 = vmatprep.subr.mxu0 0.0
        %706 = vmatpush1.msra.mxu0 0.0
        %707 = vmatprep.subr.mxu0 0.0
        %708 = vmatpush1.msra.mxu0 0.0
        %709 = vmatprep.subr.mxu0 0.0
        %710 = vmatpush1.msra.mxu0 0.0
        %711 = vmatprep.subr.mxu0 0.0
        %712 = vmatpush1.msra.mxu0 0.0
        %713 = vmatprep.subr.mxu0 0.0
        %714 = vmatpush1.msra.mxu0 0.0
        %715 = vmatprep.subr.mxu0 0.0
        %716 = vmatpush1.msra.mxu0 0.0
        %717 = vmatprep.subr.mxu0 0.0
        %718 = vmatpush1.msra.mxu0 0.0
        %719 = vmatprep.subr.mxu0 0.0
        %720 = vmatpush1.msra.mxu0 0.0
        %721 = vmatprep.subr.mxu0 0.0
        %722 = vmatpush1.msra.mxu0 0.0
        %723 = vmatprep.subr.mxu0 0.0
        %724 = vmatpush1.msra.mxu0 0.0
        %725 = vmatprep.subr.mxu0 0.0
        %726 = vmatpush1.msra.mxu0 0.0
        %727 = vmatprep.subr.mxu0 0.0
        %728 = vmatpush1.msra.mxu0 0.0
        %729 = vmatprep.mubr.f32.mxu0 0.0
        %730 = vmatmul.mubr.f32.gmra.mrb[0].mxu0 %v663
        %v731 = vpop.f32.mrb[0].mxu0
        %v732 = vadd.f32 %v660, %v731
        %v733 = vpop.f32.mrb[0].mxu0
        %734 = vdwg.mxu0
        %735 = vst.msk [vmem:[%s554] sm:$0xff] %vm574, %v732
        %v736 = vld [vmem:[%s491] sm:$0xff]
        %v737 = vld [vmem:[#allocation11] sm:$0xff]
        %v738 = vld [vmem:[#allocation11 + $0x8] sm:$0xff]
        %v739 = vld [vmem:[#allocation11 + $0x10] sm:$0xff]
        %v740 = vld [vmem:[#allocation11 + $0x18] sm:$0xff]
        %v741 = vld [vmem:[%s8] sm:$0x1]
        %v743 = vlaneseq
        %v744 = vshrl.u32 %v743, 7
        %v745 = vsub.s32 0, %v744
        %v746 = vrot.slane %v741, %v745
        %v749 = vsel %vm574, %v736, 0
        %751 = vmatprep.subr.mxu0 0.0
        %752 = vmatpush1.msra.mxu0 %v737
        %753 = vmatprep.subr.mxu0 0.0
        %754 = vmatpush1.msra.mxu0 %v738
        %755 = vmatprep.subr.mxu0 0.0
        %756 = vmatpush1.msra.mxu0 %v739
        %757 = vmatprep.subr.mxu0 0.0
        %758 = vmatpush1.msra.mxu0 %v740
        %759 = vmatprep.subr.mxu0 0.0
        %760 = vmatpush1.msra.mxu0 0.0
        %761 = vmatprep.subr.mxu0 0.0
        %762 = vmatpush1.msra.mxu0 0.0
        %763 = vmatprep.subr.mxu0 0.0
        %764 = vmatpush1.msra.mxu0 0.0
        %765 = vmatprep.subr.mxu0 0.0
        %766 = vmatpush1.msra.mxu0 0.0
        %767 = vmatprep.subr.mxu0 0.0
        %768 = vmatpush1.msra.mxu0 0.0
        %769 = vmatprep.subr.mxu0 0.0
        %770 = vmatpush1.msra.mxu0 0.0
        %771 = vmatprep.subr.mxu0 0.0
        %772 = vmatpush1.msra.mxu0 0.0
        %773 = vmatprep.subr.mxu0 0.0
        %774 = vmatpush1.msra.mxu0 0.0
        %775 = vmatprep.subr.mxu0 0.0
        %776 = vmatpush1.msra.mxu0 0.0
        %777 = vmatprep.subr.mxu0 0.0
        %778 = vmatpush1.msra.mxu0 0.0
        %779 = vmatprep.subr.mxu0 0.0
        %780 = vmatpush1.msra.mxu0 0.0
        %781 = vmatprep.subr.mxu0 0.0
        %782 = vmatpush1.msra.mxu0 0.0
        %783 = vmatprep.subr.mxu0 0.0
        %784 = vmatpush1.msra.mxu0 0.0
        %785 = vmatprep.subr.mxu0 0.0
        %786 = vmatpush1.msra.mxu0 0.0
        %787 = vmatprep.subr.mxu0 0.0
        %788 = vmatpush1.msra.mxu0 0.0
        %789 = vmatprep.subr.mxu0 0.0
        %790 = vmatpush1.msra.mxu0 0.0
        %791 = vmatprep.subr.mxu0 0.0
        %792 = vmatpush1.msra.mxu0 0.0
        %793 = vmatprep.subr.mxu0 0.0
        %794 = vmatpush1.msra.mxu0 0.0
        %795 = vmatprep.subr.mxu0 0.0
        %796 = vmatpush1.msra.mxu0 0.0
        %797 = vmatprep.subr.mxu0 0.0
        %798 = vmatpush1.msra.mxu0 0.0
        %799 = vmatprep.subr.mxu0 0.0
        %800 = vmatpush1.msra.mxu0 0.0
        %801 = vmatprep.subr.mxu0 0.0
        %802 = vmatpush1.msra.mxu0 0.0
        %803 = vmatprep.subr.mxu0 0.0
        %804 = vmatpush1.msra.mxu0 0.0
        %805 = vmatprep.subr.mxu0 0.0
        %806 = vmatpush1.msra.mxu0 0.0
        %807 = vmatprep.subr.mxu0 0.0
        %808 = vmatpush1.msra.mxu0 0.0
        %809 = vmatprep.subr.mxu0 0.0
        %810 = vmatpush1.msra.mxu0 0.0
        %811 = vmatprep.subr.mxu0 0.0
        %812 = vmatpush1.msra.mxu0 0.0
        %813 = vmatprep.subr.mxu0 0.0
        %814 = vmatpush1.msra.mxu0 0.0
        %815 = vmatprep.mubr.f32.mxu0 0.0
        %816 = vmatmul.mubr.f32.gmra.mrb[0].mxu0 %v749
        %v817 = vpop.f32.mrb[0].mxu0
        %v818 = vadd.f32 %v746, %v817
        %v819 = vpop.f32.mrb[0].mxu0
        %820 = vdwg.mxu0
        %821 = vst.msk [vmem:[%s561] sm:$0xff] %vm574, %v818
        %s822 = sand.u32 %s269, 1
        %s823 = scalar_lea.sflag [#allocation4], %s822
        %s824 = sand.u32 %s269, 1
        %s825 = smul.addr %s824, 8
        %s826 = scalar_lea.vmem [#allocation13], %s825
        %s827 = sand.u32 %s37, 1
        %s828 = scalar_lea.sflag [#allocation15], %s827
        %s829 = sand.u32 %s297, 1
        %s830 = smul.addr %s829, 8
        %s831 = scalar_lea.vmem [#allocation14], %s830
        %s832 = sand.u32 %s37, 1
        %s833 = scalar_lea.sflag [#allocation15], %s832
        %s834 = sand.u32 %s325, 1
        %s835 = smul.addr %s834, 8
        %s836 = scalar_lea.vmem [#allocation16], %s835
        // Predicated region
        $region81: #{tpu_custom_call.1} parent=55 // pred_check
          %p837 = pneg %p279
        $region82: #{tpu_custom_call.1} parent=55 // pred_check_branch
          %839 = sbr.rel (%p837) target = $region84
        $region83: #{tpu_custom_call.1} parent=55 // pred_region
          %s841 = ssub.s32 128, 128
          %842 = vsyncadd %s823, %s841
          %s843 = sadd.s32 %s42, %s41
          %s844 = smul.addr %s843, 128
          %s845 = scalar_lea.hbm %s9, %s844
          %s847 = sshll.u32 %s826, 4
          %s848 = int_to_ptr.vmem [resolvable:$true] %s847
          %850 = dma.vmem_to_hbm [thread:$0]  %s848, 128, %s845, %s823
        $region84: #{tpu_custom_call.1} parent=55 // pred_fallthru
          _
        // Predicated region
        $region85: #{tpu_custom_call.1} parent=55 // pred_check
          %p851 = pneg %p307
        $region86: #{tpu_custom_call.1} parent=55 // pred_check_branch
          %853 = sbr.rel (%p851) target = $region88
        $region87: #{tpu_custom_call.1} parent=55 // pred_region
          %s855 = ssub.s32 128, 128
          %856 = vsyncadd %s828, %s855
          %s857 = sadd.s32 %s42, %s41
          %s858 = smul.addr %s857, 128
          %s859 = scalar_lea.hbm %s10, %s858
          %s861 = sshll.u32 %s831, 4
          %s862 = int_to_ptr.vmem [resolvable:$true] %s861
          %864 = dma.vmem_to_hbm [thread:$0]  %s862, 128, %s859, %s828
        $region88: #{tpu_custom_call.1} parent=55 // pred_fallthru
          _
        // Predicated region
        $region89: #{tpu_custom_call.1} parent=55 // pred_check
          %p865 = pneg %p335
        $region90: #{tpu_custom_call.1} parent=55 // pred_check_branch
          %867 = sbr.rel (%p865) target = $region92
        $region91: #{tpu_custom_call.1} parent=55 // pred_region
          %s869 = ssub.s32 128, 128
          %870 = vsyncadd %s833, %s869
          %s871 = sadd.s32 %s42, %s41
          %s872 = smul.addr %s871, 128
          %s873 = scalar_lea.hbm %s11, %s872
          %s875 = sshll.u32 %s836, 4
          %s876 = int_to_ptr.vmem [resolvable:$true] %s875
          %878 = dma.vmem_to_hbm [thread:$0]  %s876, 128, %s873, %s833
        $region92: #{tpu_custom_call.1} parent=55 // pred_fallthru
          _
      $region56: #{tpu_custom_call.1} parent=5 // pred_fallthru
        _
      %p879 = scmp.le.s32.totalorder 2, %s32
      // Predicated region
      $region93: #{tpu_custom_call.1} parent=5 // pred_check
        %p880 = pneg %p879
      $region94: #{tpu_custom_call.1} parent=5 // pred_check_branch
        %882 = sbr.rel (%p880) target = $region96
      $region95: #{tpu_custom_call.1} parent=5 // pred_region
        %s883 = ssub.s32 %s32, 2
        // Predicated region
        $region97: #{tpu_custom_call.1} parent=95 // pred_check
          %p884 = pneg %p285
        $region98: #{tpu_custom_call.1} parent=95 // pred_check_branch
          %886 = sbr.rel (%p884) target = $region100
        $region99: #{tpu_custom_call.1} parent=95 // pred_region
          %s887 = sand.u32 %s270, 1
          %s888 = scalar_lea.sflag [#allocation4], %s887
          %s889 = sand.u32 %s270, 1
          %s890 = smul.addr %s889, 8
          %s891 = scalar_lea.vmem [#allocation13], %s890
          %892 = dma.done %s888, 128
        $region100: #{tpu_custom_call.1} parent=95 // pred_fallthru
          _
        // Predicated region
        $region101: #{tpu_custom_call.1} parent=95 // pred_check
          %p893 = pneg %p313
        $region102: #{tpu_custom_call.1} parent=95 // pred_check_branch
          %895 = sbr.rel (%p893) target = $region104
        $region103: #{tpu_custom_call.1} parent=95 // pred_region
          %s896 = sand.u32 %s38, 1
          %s897 = scalar_lea.sflag [#allocation15], %s896
          %s898 = sand.u32 %s298, 1
          %s899 = smul.addr %s898, 8
          %s900 = scalar_lea.vmem [#allocation14], %s899
          %901 = dma.done %s897, 128
        $region104: #{tpu_custom_call.1} parent=95 // pred_fallthru
          _
        // Predicated region
        $region105: #{tpu_custom_call.1} parent=95 // pred_check
          %p902 = pneg %p341
        $region106: #{tpu_custom_call.1} parent=95 // pred_check_branch
          %904 = sbr.rel (%p902) target = $region108
        $region107: #{tpu_custom_call.1} parent=95 // pred_region
          %s905 = sand.u32 %s38, 1
          %s906 = scalar_lea.sflag [#allocation15], %s905
          %s907 = sand.u32 %s326, 1
          %s908 = smul.addr %s907, 8
          %s909 = scalar_lea.vmem [#allocation16], %s908
          %910 = dma.done %s906, 128
        $region108: #{tpu_custom_call.1} parent=95 // pred_fallthru
          _
      $region96: #{tpu_custom_call.1} parent=5 // pred_fallthru
        _
    $region6: #{tpu_custom_call.1} parent=1 // loop_footer
      %s36 = sadd.s32 1, %s32
    $region7: #{tpu_custom_call.1} parent=1 // loop_footer_branch
      %31 = sbr.rel target = $region3
    $region8: #{tpu_custom_call.1} parent=1 // loop_exit
      _
    %911 = vsyncpa [#allocation3], 1
    %s912 = scalar_lea.sflag [#allocation3], 1
    %913 = vsyncpa %s912, 1
    %914 = vsyncpa [#allocation6], 1
    %s915 = scalar_lea.sflag [#allocation6], 1
    %916 = vsyncpa %s915, 1
    %917 = vsyncpa [#allocation9], 1
    %918 = vsyncpa [#allocation12], 1
    %919 = vsyncpa [#allocation4], 1
    %s920 = scalar_lea.sflag [#allocation4], 1
    %921 = vsyncpa %s920, 1
    %922 = vsyncpa [#allocation15], 1
    %s923 = scalar_lea.sflag [#allocation15], 1
    %924 = vsyncpa %s923, 1

</llo_original>
